<compile_context>
chip_gen: v7x
topology: tpu7x:2x2x1
jax: 0.10.0
libtpu: 0.0.40
codegen_flags: <defaults>
</compile_context>

<pallas_src>
import jax
import jax.numpy as jnp
from jax.experimental import pallas as pl
from jax.experimental.pallas import tpu as pltpu

LANE = 128      # vreg lane width; every feature dimension is zero-padded to this
SUBLANE = 8     # f32 sublane tile; batch is rounded up to a multiple of this
NUM_W = 8       # packed weight matrices: pw1, pw2, rw1, rw2, l1wf, l1ws, l2w, l3w


def dqn_kernel(x3_ref, xs_ref, w_ref, b_ref, out_ref):
    """x3_ref : (extra, bt, LANE)   bf16  per-element inputs, extra-major
       xs_ref : (bt, LANE)          bf16  static inputs
       w_ref  : (NUM_W*LANE, LANE)  bf16  packed weight slab (row-blocks of 128)
       b_ref  : (8, LANE)           f32   packed bias rows
       out_ref: (bt, LANE)          f32   lane-dense output (cols >= output_size are 0)
    """
    f32, bf16 = jnp.float32, jnp.bfloat16
    extra, bt, _ = x3_ref.shape

    def w(k):
        # Static, 128-row-aligned view into the weight slab (zero-cost slice).
        return w_ref[k * LANE:(k + 1) * LANE, :]

    b = b_ref[...]
    pb1, pb2, rb1, rb2 = b[0:1, :], b[1:2, :], b[2:3, :], b[3:4, :]
    l1b, l2b, l3b = b[4:5, :], b[5:6, :], b[6:7, :]

    # --- phi first Linear + ReLU on all (extra*bt) rows in one MXU pass ------
    x = x3_ref[...].reshape(extra * bt, LANE)           # tile-aligned collapse
    h = jnp.dot(x, w(0), preferred_element_type=f32) + pb1
    h = jnp.maximum(h, 0.0)

    # Per-set sum over extra_num BEFORE phi's second Linear (linearity):
    #   sum_e (h_e @ W2 + b2) == (sum_e h_e) @ W2 + extra*b2
    # The reduce is `extra` VPU adds of tile-aligned (bt,128) slabs.
    hsum = h.reshape(extra, bt, LANE).sum(axis=0)
    fsum = (jnp.dot(hsum.astype(bf16), w(1), preferred_element_type=f32)
            + pb2 * float(extra))

    # --- rho network: Linear -> ReLU -> Linear -------------------------------
    h = jnp.dot(fsum.astype(bf16), w(2), preferred_element_type=f32) + rb1
    h = jnp.maximum(h, 0.0)
    rho = jnp.dot(h.astype(bf16), w(3), preferred_element_type=f32) + rb2

    # --- head: l1(cat(rho, x_static)) split into two matmuls -> ReLU -> l2 -> ReLU -> l3
    h = (jnp.dot(rho.astype(bf16), w(4), preferred_element_type=f32)
         + jnp.dot(xs_ref[...], w(5), preferred_element_type=f32)
         + l1b)
    h = jnp.maximum(h, 0.0)
    h = jnp.dot(h.astype(bf16), w(6), preferred_element_type=f32) + l2b
    h = jnp.maximum(h, 0.0)
    out_ref[...] = jnp.dot(h.astype(bf16), w(7), preferred_element_type=f32) + l3b


def _round_up(n, m):
    return ((n + m - 1) // m) * m


def pack_params(params):
    """Pack the 15 logical (in,out)/(1,out) params into a bf16 weight slab
    (NUM_W*LANE, LANE) and an f32 bias slab (8, LANE), zero-padded to 128 lanes."""
    (pw1, pb1, pw2, pb2, rw1, rb1, rw2, rb2,
     l1wf, l1ws, l1b, l2w, l2b, l3w, l3b) = params
    weights = (pw1, pw2, rw1, rw2, l1wf, l1ws, l2w, l3w)
    biases = (pb1, pb2, rb1, rb2, l1b, l2b, l3b)
    for a in weights + biases:
        assert a.shape[0] <= LANE and a.shape[-1] <= LANE, \
            "all feature dims must be <= 128 for single-slab packing"

    def pad(a, rows, cols):
        return jnp.zeros((rows, cols), jnp.float32).at[:a.shape[0], :a.shape[1]].set(a)

    wslab = jnp.concatenate([pad(wt, LANE, LANE) for wt in weights], axis=0)
    bslab = jnp.concatenate([pad(bi, 1, LANE) for bi in biases]
                            + [jnp.zeros((1, LANE), jnp.float32)], axis=0)
    return wslab.astype(jnp.bfloat16), bslab


def dqn_forward(x, x_static, params, *, extra_num, input_size, static_size,
                output_size, batch_tile=256):
    """x: (batch, extra_num*input_size) f32, x_static: (batch, static_size) f32."""
    batch = x.shape[0]
    wslab, bslab = pack_params(params)          # one-time packing (hoist in training)

    if batch > batch_tile:
        bt = _round_up(batch_tile, SUBLANE)
        num_tiles = pl.cdiv(batch, bt)
    else:
        bt = _round_up(batch, SUBLANE)
        num_tiles = 1
    batch_p = num_tiles * bt

    def pad2d(a, rows, cols):
        return jnp.zeros((rows, cols), a.dtype).at[:a.shape[0], :a.shape[1]].set(a)

    # extra-major 3-D layout (extra, batch_p, LANE); padded lanes / padded batch
    # rows multiply zero weight rows or are sliced away, so the math is unchanged.
    x3 = x.reshape(batch, extra_num, input_size).transpose(1, 0, 2)
    x3 = (jnp.zeros((extra_num, batch_p, LANE), jnp.float32)
          .at[:, :batch, :input_size].set(x3).astype(jnp.bfloat16))
    xs = pad2d(x_static.reshape(batch, static_size),
               batch_p, LANE).astype(jnp.bfloat16)

    out = pl.pallas_call(
        dqn_kernel,
        out_shape=jax.ShapeDtypeStruct((batch_p, LANE), jnp.float32),
        grid=(num_tiles,),
        in_specs=[
            pl.BlockSpec((extra_num, bt, LANE), lambda i: (0, i, 0)),
            pl.BlockSpec((bt, LANE), lambda i: (i, 0)),
            pl.BlockSpec((NUM_W * LANE, LANE), lambda i: (0, 0)),  # VMEM-resident
            pl.BlockSpec((8, LANE), lambda i: (0, 0)),             # VMEM-resident
        ],
        out_specs=pl.BlockSpec((bt, LANE), lambda i: (i, 0)),
        compiler_params=pltpu.CompilerParams(
            dimension_semantics=("parallel",)),
    )(x3, xs, wslab, bslab)
    return out[:batch, :output_size]


def init_params(key, input_size, feature_size, static_size, hidden_size, output_size):
    """Deterministic init, PyTorch-Linear-style uniform(-1/sqrt(fan_in), 1/sqrt(fan_in)).
    Weights are stored transposed: (in_features, out_features)."""
    def linear(k, fan_in, fan_out):
        kw, kb = jax.random.split(k)
        bound = 1.0 / jnp.sqrt(fan_in)
        w = jax.random.uniform(kw, (fan_in, fan_out), jnp.float32, -bound, bound)
        b = jax.random.uniform(kb, (1, fan_out), jnp.float32, -bound, bound)
        return w, b

    keys = jax.random.split(key, 7)
    pw1, pb1 = linear(keys[0], input_size, hidden_size)
    pw2, pb2 = linear(keys[1], hidden_size, feature_size)
    rw1, rb1 = linear(keys[2], feature_size, hidden_size)
    rw2, rb2 = linear(keys[3], hidden_size, feature_size)
    # l1 takes cat(rho_out, x_static): (feature_size + static_size) -> hidden
    l1w, l1b = linear(keys[4], feature_size + static_size, hidden_size)
    l1wf, l1ws = l1w[:feature_size, :], l1w[feature_size:, :]
    l2w, l2b = linear(keys[5], hidden_size, hidden_size)
    l3w, l3b = linear(keys[6], hidden_size, output_size)
    return (pw1, pb1, pw2, pb2, rw1, rb1, rw2, rb2,
            l1wf, l1ws, l1b, l2w, l2b, l3w, l3b)


def dqn_reference(x, x_static, params, *, extra_num, input_size, static_size,
                  matmul_dtype=jnp.float32, sum_first=False):
    """Plain-JAX reference. Default (f32, sum_first=False) mirrors the PyTorch
    forward exactly. With matmul_dtype=bfloat16 and sum_first=True it reproduces
    the kernel's precision and operation ordering (mathematically identical)."""
    (pw1, pb1, pw2, pb2, rw1, rb1, rw2, rb2,
     l1wf, l1ws, l1b, l2w, l2b, l3w, l3b) = params

    def mm(a, w):
        return jnp.dot(a.astype(matmul_dtype), w.astype(matmul_dtype),
                       preferred_element_type=jnp.float32)

    x3 = x.reshape(-1, extra_num, input_size)
    xs = x_static.reshape(-1, static_size)
    h = jax.nn.relu(mm(x3, pw1) + pb1[0])
    if sum_first:
        fsum = mm(jnp.sum(h, axis=1), pw2) + pb2[0] * extra_num
    else:
        phi = mm(h, pw2) + pb2[0]
        fsum = jnp.sum(phi, axis=1)
    h = jax.nn.relu(mm(fsum, rw1) + rb1[0])
    rho = mm(h, rw2) + rb2[0]
    # cat(rho, xs) @ l1w == rho @ l1wf + xs @ l1ws
    h = jax.nn.relu(mm(rho, l1wf) + mm(xs, l1ws) + l1b[0])
    h = jax.nn.relu(mm(h, l2w) + l2b[0])
    return mm(h, l3w) + l3b[0]


if __name__ == "__main__":
    # Small, module-consistent sizes.
    batch = 2
    extra_num = 8
    input_size = 16
    feature_size = 16
    static_size = 8
    hidden_size = 32
    output_size = 4

    key = jax.random.PRNGKey(0)
    k_x, k_s, k_p = jax.random.split(key, 3)
    x = jax.random.normal(k_x, (batch, extra_num * input_size), jnp.float32)
    x_static = jax.random.normal(k_s, (batch, static_size), jnp.float32)
    params = init_params(k_p, input_size, feature_size, static_size,
                         hidden_size, output_size)

    out = dqn_forward(x, x_static, params,
                      extra_num=extra_num, input_size=input_size,
                      static_size=static_size, output_size=output_size)
    out = jax.block_until_ready(out)
    assert out.shape == (batch, output_size)

    # Tight check against a precision/ordering-matched (bf16-matmul) reference ...
    ref_bf16 = dqn_reference(x, x_static, params,
                             extra_num=extra_num, input_size=input_size,
                             static_size=static_size,
                             matmul_dtype=jnp.bfloat16, sum_first=True)
    assert jnp.allclose(out, ref_bf16, atol=5e-3, rtol=5e-3), "mismatch vs bf16 reference"

    # ... and a loose drift check against the full-f32 (PyTorch-equivalent) reference.
    ref_f32 = dqn_reference(x, x_static, params,
                            extra_num=extra_num, input_size=input_size,
                            static_size=static_size,
                            matmul_dtype=jnp.float32, sum_first=False)
    assert jnp.allclose(out, ref_f32, atol=5e-2, rtol=5e-2), "mismatch vs f32 reference"

    print("KERNEL_OK")
</pallas_src>

<mosaic_0001>
module attributes {stable_mosaic.version = 11 : i64} {
  func.func @dqn_kernel(%arg0: i32, %arg1: memref<8x8x128xbf16, #tpu.memory_space<vmem>>, %arg2: memref<8x128xbf16, #tpu.memory_space<vmem>>, %arg3: memref<1024x128xbf16, #tpu.memory_space<vmem>>, %arg4: memref<8x128xf32, #tpu.memory_space<vmem>>, %arg5: memref<8x128xf32, #tpu.memory_space<vmem>>) attributes {dimension_semantics = [#tpu.dimension_semantics<parallel>], iteration_bounds = array<i64: 1>, scalar_prefetch = 0 : i64, scratch_operands = 0 : i64, tpu.core_type = #tpu.core_type<tc>, window_params = [{transform_indices = @transform_0, window_bounds = array<i64: 8, 8, 128>}, {transform_indices = @transform_1, window_bounds = array<i64: 8, 128>}, {pipeline_mode = #tpu.pipeline_mode<synchronous>, transform_indices = @transform_2, window_bounds = array<i64: 1024, 128>}, {pipeline_mode = #tpu.pipeline_mode<synchronous>, transform_indices = @transform_3, window_bounds = array<i64: 8, 128>}, {transform_indices = @transform_4, window_bounds = array<i64: 8, 128>}]} {
    %c0 = arith.constant 0 : index
    %c0_0 = arith.constant 0 : index
    %0 = vector.load %arg4[%c0, %c0_0] : memref<8x128xf32, #tpu.memory_space<vmem>>, vector<8x128xf32>
    %1 = vector.extract_strided_slice %0 {offsets = [0, 0], sizes = [1, 128], strides = [1, 1]} : vector<8x128xf32> to vector<1x128xf32>
    %2 = vector.extract_strided_slice %0 {offsets = [1, 0], sizes = [1, 128], strides = [1, 1]} : vector<8x128xf32> to vector<1x128xf32>
    %3 = vector.extract_strided_slice %0 {offsets = [2, 0], sizes = [1, 128], strides = [1, 1]} : vector<8x128xf32> to vector<1x128xf32>
    %4 = vector.extract_strided_slice %0 {offsets = [3, 0], sizes = [1, 128], strides = [1, 1]} : vector<8x128xf32> to vector<1x128xf32>
    %5 = vector.extract_strided_slice %0 {offsets = [4, 0], sizes = [1, 128], strides = [1, 1]} : vector<8x128xf32> to vector<1x128xf32>
    %6 = vector.extract_strided_slice %0 {offsets = [5, 0], sizes = [1, 128], strides = [1, 1]} : vector<8x128xf32> to vector<1x128xf32>
    %7 = vector.extract_strided_slice %0 {offsets = [6, 0], sizes = [1, 128], strides = [1, 1]} : vector<8x128xf32> to vector<1x128xf32>
    %c0_1 = arith.constant 0 : index
    %c0_2 = arith.constant 0 : index
    %c0_3 = arith.constant 0 : index
    %8 = vector.load %arg1[%c0_1, %c0_2, %c0_3] : memref<8x8x128xbf16, #tpu.memory_space<vmem>>, vector<8x8x128xbf16>
    %9 = vector.shape_cast %8 : vector<8x8x128xbf16> to vector<64x128xbf16>
    %c0_4 = arith.constant 0 : index
    %c0_5 = arith.constant 0 : index
    %10 = vector.load %arg3[%c0_4, %c0_5] : memref<1024x128xbf16, #tpu.memory_space<vmem>>, vector<128x128xbf16>
    %cst = arith.constant dense<0.000000e+00> : vector<64x128xf32>
    %11 = tpu.matmul %9, %10, %cst {dimension_numbers = #tpu.dot_dimension_numbers<[1], [0], [0], [1], [0, 0, 1, 1], [], []>} : vector<64x128xbf16>, vector<128x128xbf16>, vector<64x128xf32> -> vector<64x128xf32>
    %12 = vector.broadcast %1 : vector<1x128xf32> to vector<64x128xf32>
    %13 = arith.addf %11, %12 : vector<64x128xf32>
    %cst_6 = arith.constant 0.000000e+00 : f32
    %14 = vector.broadcast %cst_6 : f32 to vector<64x128xf32>
    %15 = arith.maximumf %13, %14 : vector<64x128xf32>
    %16 = vector.shape_cast %15 : vector<64x128xf32> to vector<8x8x128xf32>
    %cst_7 = arith.constant dense<0.000000e+00> : vector<8x128xf32>
    %17 = vector.multi_reduction <add>, %16, %cst_7 [0] : vector<8x8x128xf32> to vector<8x128xf32>
    %18 = arith.truncf %17 : vector<8x128xf32> to vector<8x128xbf16>
    %c128 = arith.constant 128 : index
    %c0_8 = arith.constant 0 : index
    %19 = vector.load %arg3[%c128, %c0_8] : memref<1024x128xbf16, #tpu.memory_space<vmem>>, vector<128x128xbf16>
    %cst_9 = arith.constant dense<0.000000e+00> : vector<8x128xf32>
    %20 = tpu.matmul %18, %19, %cst_9 {dimension_numbers = #tpu.dot_dimension_numbers<[1], [0], [0], [1], [0, 0, 1, 1], [], []>} : vector<8x128xbf16>, vector<128x128xbf16>, vector<8x128xf32> -> vector<8x128xf32>
    %cst_10 = arith.constant 8.000000e+00 : f32
    %21 = vector.broadcast %cst_10 : f32 to vector<1x128xf32>
    %22 = arith.mulf %2, %21 : vector<1x128xf32>
    %23 = vector.broadcast %22 : vector<1x128xf32> to vector<8x128xf32>
    %24 = arith.addf %20, %23 : vector<8x128xf32>
    %25 = arith.truncf %24 : vector<8x128xf32> to vector<8x128xbf16>
    %c256 = arith.constant 256 : index
    %c0_11 = arith.constant 0 : index
    %26 = vector.load %arg3[%c256, %c0_11] : memref<1024x128xbf16, #tpu.memory_space<vmem>>, vector<128x128xbf16>
    %cst_12 = arith.constant dense<0.000000e+00> : vector<8x128xf32>
    %27 = tpu.matmul %25, %26, %cst_12 {dimension_numbers = #tpu.dot_dimension_numbers<[1], [0], [0], [1], [0, 0, 1, 1], [], []>} : vector<8x128xbf16>, vector<128x128xbf16>, vector<8x128xf32> -> vector<8x128xf32>
    %28 = vector.broadcast %3 : vector<1x128xf32> to vector<8x128xf32>
    %29 = arith.addf %27, %28 : vector<8x128xf32>
    %cst_13 = arith.constant 0.000000e+00 : f32
    %30 = vector.broadcast %cst_13 : f32 to vector<8x128xf32>
    %31 = arith.maximumf %29, %30 : vector<8x128xf32>
    %32 = arith.truncf %31 : vector<8x128xf32> to vector<8x128xbf16>
    %c384 = arith.constant 384 : index
    %c0_14 = arith.constant 0 : index
    %33 = vector.load %arg3[%c384, %c0_14] : memref<1024x128xbf16, #tpu.memory_space<vmem>>, vector<128x128xbf16>
    %cst_15 = arith.constant dense<0.000000e+00> : vector<8x128xf32>
    %34 = tpu.matmul %32, %33, %cst_15 {dimension_numbers = #tpu.dot_dimension_numbers<[1], [0], [0], [1], [0, 0, 1, 1], [], []>} : vector<8x128xbf16>, vector<128x128xbf16>, vector<8x128xf32> -> vector<8x128xf32>
    %35 = vector.broadcast %4 : vector<1x128xf32> to vector<8x128xf32>
    %36 = arith.addf %34, %35 : vector<8x128xf32>
    %37 = arith.truncf %36 : vector<8x128xf32> to vector<8x128xbf16>
    %c512 = arith.constant 512 : index
    %c0_16 = arith.constant 0 : index
    %38 = vector.load %arg3[%c512, %c0_16] : memref<1024x128xbf16, #tpu.memory_space<vmem>>, vector<128x128xbf16>
    %cst_17 = arith.constant dense<0.000000e+00> : vector<8x128xf32>
    %39 = tpu.matmul %37, %38, %cst_17 {dimension_numbers = #tpu.dot_dimension_numbers<[1], [0], [0], [1], [0, 0, 1, 1], [], []>} : vector<8x128xbf16>, vector<128x128xbf16>, vector<8x128xf32> -> vector<8x128xf32>
    %c0_18 = arith.constant 0 : index
    %c0_19 = arith.constant 0 : index
    %40 = vector.load %arg2[%c0_18, %c0_19] : memref<8x128xbf16, #tpu.memory_space<vmem>>, vector<8x128xbf16>
    %c640 = arith.constant 640 : index
    %c0_20 = arith.constant 0 : index
    %41 = vector.load %arg3[%c640, %c0_20] : memref<1024x128xbf16, #tpu.memory_space<vmem>>, vector<128x128xbf16>
    %cst_21 = arith.constant dense<0.000000e+00> : vector<8x128xf32>
    %42 = tpu.matmul %40, %41, %cst_21 {dimension_numbers = #tpu.dot_dimension_numbers<[1], [0], [0], [1], [0, 0, 1, 1], [], []>} : vector<8x128xbf16>, vector<128x128xbf16>, vector<8x128xf32> -> vector<8x128xf32>
    %43 = arith.addf %39, %42 : vector<8x128xf32>
    %44 = vector.broadcast %5 : vector<1x128xf32> to vector<8x128xf32>
    %45 = arith.addf %43, %44 : vector<8x128xf32>
    %cst_22 = arith.constant 0.000000e+00 : f32
    %46 = vector.broadcast %cst_22 : f32 to vector<8x128xf32>
    %47 = arith.maximumf %45, %46 : vector<8x128xf32>
    %48 = arith.truncf %47 : vector<8x128xf32> to vector<8x128xbf16>
    %c768 = arith.constant 768 : index
    %c0_23 = arith.constant 0 : index
    %49 = vector.load %arg3[%c768, %c0_23] : memref<1024x128xbf16, #tpu.memory_space<vmem>>, vector<128x128xbf16>
    %cst_24 = arith.constant dense<0.000000e+00> : vector<8x128xf32>
    %50 = tpu.matmul %48, %49, %cst_24 {dimension_numbers = #tpu.dot_dimension_numbers<[1], [0], [0], [1], [0, 0, 1, 1], [], []>} : vector<8x128xbf16>, vector<128x128xbf16>, vector<8x128xf32> -> vector<8x128xf32>
    %51 = vector.broadcast %6 : vector<1x128xf32> to vector<8x128xf32>
    %52 = arith.addf %50, %51 : vector<8x128xf32>
    %cst_25 = arith.constant 0.000000e+00 : f32
    %53 = vector.broadcast %cst_25 : f32 to vector<8x128xf32>
    %54 = arith.maximumf %52, %53 : vector<8x128xf32>
    %55 = arith.truncf %54 : vector<8x128xf32> to vector<8x128xbf16>
    %c896 = arith.constant 896 : index
    %c0_26 = arith.constant 0 : index
    %56 = vector.load %arg3[%c896, %c0_26] : memref<1024x128xbf16, #tpu.memory_space<vmem>>, vector<128x128xbf16>
    %cst_27 = arith.constant dense<0.000000e+00> : vector<8x128xf32>
    %57 = tpu.matmul %55, %56, %cst_27 {dimension_numbers = #tpu.dot_dimension_numbers<[1], [0], [0], [1], [0, 0, 1, 1], [], []>} : vector<8x128xbf16>, vector<128x128xbf16>, vector<8x128xf32> -> vector<8x128xf32>
    %58 = vector.broadcast %7 : vector<1x128xf32> to vector<8x128xf32>
    %59 = arith.addf %57, %58 : vector<8x128xf32>
    %c0_28 = arith.constant 0 : index
    %c0_29 = arith.constant 0 : index
    %60 = vector.load %arg5[%c0_28, %c0_29] : memref<8x128xf32, #tpu.memory_space<vmem>>, vector<8x128xf32>
    tpu.vector_store %arg5[%c0_28, %c0_29], %59 {strides = array<i32>} : memref<8x128xf32, #tpu.memory_space<vmem>>, vector<8x128xf32>,
    return
  }
  func.func @transform_0(%arg0: i32) -> (i32, i32, i32) {
    %c0_i32 = arith.constant 0 : i32
    %c0_i32_0 = arith.constant 0 : i32
    %c0_i32_1 = arith.constant 0 : i32
    return %c0_i32, %arg0, %c0_i32_0 : i32, i32, i32
  }
  func.func @transform_1(%arg0: i32) -> (i32, i32) {
    %c0_i32 = arith.constant 0 : i32
    %c0_i32_0 = arith.constant 0 : i32
    return %arg0, %c0_i32 : i32, i32
  }
  func.func @transform_2(%arg0: i32) -> (i32, i32) {
    %c0_i32 = arith.constant 0 : i32
    %c0_i32_0 = arith.constant 0 : i32
    %c0_i32_1 = arith.constant 0 : i32
    return %c0_i32, %c0_i32_0 : i32, i32
  }
  func.func @transform_3(%arg0: i32) -> (i32, i32) {
    %c0_i32 = arith.constant 0 : i32
    %c0_i32_0 = arith.constant 0 : i32
    %c0_i32_1 = arith.constant 0 : i32
    return %c0_i32, %c0_i32_0 : i32, i32
  }
  func.func @transform_4(%arg0: i32) -> (i32, i32) {
    %c0_i32 = arith.constant 0 : i32
    %c0_i32_0 = arith.constant 0 : i32
    return %arg0, %c0_i32 : i32, i32
  }
}

</mosaic_0001>

<llo_original>
// kernel: tpu_custom_call.1
$region0: #{tpu_custom_call.1}
  #allocation0 [shape = 'u32[]', space=smem, size = 0x4, offset = 0x4, fixed_abs, tag = 'smem constant byte address 0x4 - core index']
  #allocation1 [shape = 'u32[144,128]{1,0:T(1,128)}', space=vmem, size = 0x12000, scoped, tag = 'internal scratch']
  %s0 = inlined_call_operand.hbm [shape: bf16[8,8,128], index: 0, kind: input, shape index: {}]
  %s1 = inlined_call_operand.hbm [shape: bf16[8,128], index: 1, kind: input, shape index: {}]
  %s2 = inlined_call_operand.hbm [shape: bf16[1024,128], index: 2, kind: input, shape index: {}]
  %s3 = inlined_call_operand.vmem [shape: f32[8,128], index: 3, kind: input, shape index: {}]
  %s4 = inlined_call_operand.hbm [shape: f32[8,128], index: 4, kind: output, shape index: {}]
  %s5 = sld [smem:[#allocation0]]
  $region38: #{tpu_custom_call.1} parent=0
    _
  %s7 = ssub.s32 1, %s5
  %s8 = scalar_select 0, %s7, %s5
  $region1: #{tpu_custom_call.1} parent=0
    #allocation2 [shape = 'u8[16384]{0}', space=vmem, size = 0x4000, scoped, tag = 'input window, operand 0, single buffered']
    #allocation3 [shape = 's32[1]{0}', space=sflag, size = 0x4, scoped, tag = 'scoped memory for tpu_custom_call.1']
    #allocation4 [shape = 's32[1]{0}', space=sflag, size = 0x4, scoped, tag = 'scoped memory for tpu_custom_call.1']
    #allocation5 [shape = 'u8[2048]{0}', space=vmem, size = 0x800, scoped, tag = 'input window, operand 1, single buffered']
    #allocation6 [shape = 's32[1]{0}', space=sflag, size = 0x4, scoped, tag = 'scoped memory for tpu_custom_call.1']
    #allocation7 [shape = 'u8[262144]{0}', space=vmem, size = 0x40000, scoped, tag = 'input window, operand 2, single buffered']
    #allocation8 [shape = 'u8[4096]{0}', space=vmem, size = 0x1000, scoped, tag = 'output window, operand 0, single buffered']
    %9 = vsyncpa [#allocation3], 0
    %10 = vsyncpa [#allocation6], 0
    %11 = vsyncpa [#allocation4], 0
    // Predicated region
    $region2: #{tpu_custom_call.1} parent=1 // pred_check
      _
    $region3: #{tpu_custom_call.1} parent=1 // pred_check_branch
      %13 = sbr.rel (0) target = $region5
    $region4: #{tpu_custom_call.1} parent=1 // pred_region
      %s15 = ssub.s32 512, 512
      %16 = vsyncadd [#allocation3], %s15
      %s17 = sshll.u32 [#allocation2], 4
      %s18 = int_to_ptr.vmem [resolvable:$true] %s17
      %23 = dma.hbm_to_vmem [thread:$0]  %s0, 512, %s18, [#allocation3], 64, 64, 4
    $region5: #{tpu_custom_call.1} parent=1 // pred_fallthru
      _
    // Predicated region
    $region6: #{tpu_custom_call.1} parent=1 // pred_check
      _
    $region7: #{tpu_custom_call.1} parent=1 // pred_check_branch
      %25 = sbr.rel (0) target = $region9
    $region8: #{tpu_custom_call.1} parent=1 // pred_region
      %s27 = ssub.s32 64, 64
      %28 = vsyncadd [#allocation6], %s27
      %s30 = sshll.u32 [#allocation5], 4
      %s31 = int_to_ptr.vmem [resolvable:$true] %s30
      %33 = dma.hbm_to_vmem [thread:$0]  %s1, 64, %s31, [#allocation6]
    $region9: #{tpu_custom_call.1} parent=1 // pred_fallthru
      _
    // Predicated region
    $region10: #{tpu_custom_call.1} parent=1 // pred_check
      _
    $region11: #{tpu_custom_call.1} parent=1 // pred_check_branch
      %35 = sbr.rel (0) target = $region13
    $region12: #{tpu_custom_call.1} parent=1 // pred_region
      %s37 = ssub.s32 8192, 8192
      %38 = vsyncadd [#allocation6], %s37
      %s39 = sshll.u32 [#allocation7], 4
      %s40 = int_to_ptr.vmem [resolvable:$true] %s39
      %45 = dma.hbm_to_vmem [thread:$0]  %s2, 8192, %s40, [#allocation6], 64, 64, 4
    $region13: #{tpu_custom_call.1} parent=1 // pred_fallthru
      _
    // Predicated region
    $region14: #{tpu_custom_call.1} parent=1 // pred_check
      _
    $region15: #{tpu_custom_call.1} parent=1 // pred_check_branch
      %47 = sbr.rel (0) target = $region17
    $region16: #{tpu_custom_call.1} parent=1 // pred_region
      _
    $region17: #{tpu_custom_call.1} parent=1 // pred_fallthru
      _
    // Predicated region
    $region18: #{tpu_custom_call.1} parent=1 // pred_check
      _
    $region19: #{tpu_custom_call.1} parent=1 // pred_check_branch
      %49 = sbr.rel (0) target = $region21
    $region20: #{tpu_custom_call.1} parent=1 // pred_region
      %50 = dma.done [#allocation3], 512
    $region21: #{tpu_custom_call.1} parent=1 // pred_fallthru
      _
    // Predicated region
    $region22: #{tpu_custom_call.1} parent=1 // pred_check
      _
    $region23: #{tpu_custom_call.1} parent=1 // pred_check_branch
      %52 = sbr.rel (0) target = $region25
    $region24: #{tpu_custom_call.1} parent=1 // pred_region
      %53 = dma.done [#allocation6], 64
    $region25: #{tpu_custom_call.1} parent=1 // pred_fallthru
      _
    // Predicated region
    $region26: #{tpu_custom_call.1} parent=1 // pred_check
      _
    $region27: #{tpu_custom_call.1} parent=1 // pred_check_branch
      %55 = sbr.rel (0) target = $region29
    $region28: #{tpu_custom_call.1} parent=1 // pred_region
      %56 = dma.done [#allocation6], 8192
    $region29: #{tpu_custom_call.1} parent=1 // pred_fallthru
      _
    %v58 = vld [vmem:[%s3] sm:$0xff]
    %v59 = vld [vmem:[#allocation2] sm:$0xf]
    %v60 = vld [vmem:[#allocation2 + $0x4] sm:$0xf]
    %v61 = vld [vmem:[#allocation2 + $0x8] sm:$0xf]
    %v62 = vld [vmem:[#allocation2 + $0xc] sm:$0xf]
    %v63 = vld [vmem:[#allocation2 + $0x10] sm:$0xf]
    %v64 = vld [vmem:[#allocation2 + $0x14] sm:$0xf]
    %v65 = vld [vmem:[#allocation2 + $0x18] sm:$0xf]
    %v66 = vld [vmem:[#allocation2 + $0x1c] sm:$0xf]
    %v67 = vld [vmem:[#allocation7] sm:$0xf]
    %v68 = vld [vmem:[#allocation7 + $0x4] sm:$0xf]
    %v69 = vld [vmem:[#allocation7 + $0x8] sm:$0xf]
    %v70 = vld [vmem:[#allocation7 + $0xc] sm:$0xf]
    %v71 = vld [vmem:[#allocation7 + $0x10] sm:$0xf]
    %v72 = vld [vmem:[#allocation7 + $0x14] sm:$0xf]
    %v73 = vld [vmem:[#allocation7 + $0x18] sm:$0xf]
    %v74 = vld [vmem:[#allocation7 + $0x1c] sm:$0xf]
    %v75 = vld [vmem:[#allocation7 + $0x20] sm:$0xf]
    %v76 = vld [vmem:[#allocation7 + $0x24] sm:$0xf]
    %v77 = vld [vmem:[#allocation7 + $0x28] sm:$0xf]
    %v78 = vld [vmem:[#allocation7 + $0x2c] sm:$0xf]
    %v79 = vld [vmem:[#allocation7 + $0x30] sm:$0xf]
    %v80 = vld [vmem:[#allocation7 + $0x34] sm:$0xf]
    %v81 = vld [vmem:[#allocation7 + $0x38] sm:$0xf]
    %v82 = vld [vmem:[#allocation7 + $0x3c] sm:$0xf]
    %v83 = vlaneseq
    %v84 = vshrl.u32 %v83, 7
    %v85 = vsub.s32 0, %v84
    %v86 = vrot.slane %v58, %v85
    %v95 = vunpack.c.l.b16 %v59
    %v96 = vunpack.c.l.b16 %v60
    %v97 = vunpack.c.l.b16 %v61
    %v98 = vunpack.c.l.b16 %v62
    %v99 = vunpack.c.l.b16 %v63
    %v100 = vunpack.c.l.b16 %v64
    %v101 = vunpack.c.l.b16 %v65
    %v102 = vunpack.c.l.b16 %v66
    %v103 = vpack.c.b16 %v96, %v95
    %v104 = vpack.c.b16 %v98, %v97
    %v105 = vpack.c.b16 %v100, %v99
    %v106 = vpack.c.b16 %v102, %v101
    %v127 = vunpack.c.l.b16 %v67
    %v128 = vunpack.c.l.b16 %v68
    %v129 = vunpack.c.l.b16 %v69
    %v130 = vunpack.c.l.b16 %v70
    %v131 = vunpack.c.l.b16 %v71
    %v132 = vunpack.c.l.b16 %v72
    %v133 = vunpack.c.l.b16 %v73
    %v134 = vunpack.c.l.b16 %v74
    %v135 = vunpack.c.l.b16 %v75
    %v136 = vunpack.c.l.b16 %v76
    %v137 = vunpack.c.l.b16 %v77
    %v138 = vunpack.c.l.b16 %v78
    %v139 = vunpack.c.l.b16 %v79
    %v140 = vunpack.c.l.b16 %v80
    %v141 = vunpack.c.l.b16 %v81
    %v142 = vunpack.c.l.b16 %v82
    %v143 = vpack.c.b16 %v128, %v127
    %v144 = vpack.c.b16 %v130, %v129
    %v145 = vpack.c.b16 %v132, %v131
    %v146 = vpack.c.b16 %v134, %v133
    %v147 = vpack.c.b16 %v136, %v135
    %v148 = vpack.c.b16 %v138, %v137
    %v149 = vpack.c.b16 %v140, %v139
    %v150 = vpack.c.b16 %v142, %v141
    %159 = vmatprep.subr.bf16.mxu0 0
    %160 = vmatpush1.bf16.msra.mxu0 %v143
    %161 = vmatprep.subr.bf16.mxu0 0
    %162 = vmatpush1.bf16.msra.mxu0 %v144
    %163 = vmatprep.subr.bf16.mxu0 0
    %164 = vmatpush1.bf16.msra.mxu0 %v145
    %165 = vmatprep.subr.bf16.mxu0 0
    %166 = vmatpush1.bf16.msra.mxu0 %v146
    %167 = vmatprep.subr.bf16.mxu0 0
    %168 = vmatpush1.bf16.msra.mxu0 %v147
    %169 = vmatprep.subr.bf16.mxu0 0
    %170 = vmatpush1.bf16.msra.mxu0 %v148
    %171 = vmatprep.subr.bf16.mxu0 0
    %172 = vmatpush1.bf16.msra.mxu0 %v149
    %173 = vmatprep.subr.bf16.mxu0 0
    %174 = vmatpush1.bf16.msra.mxu0 %v150
    %175 = vmatprep.subr.bf16.mxu0 0
    %176 = vmatpush1.bf16.msra.mxu0 0
    %177 = vmatprep.subr.bf16.mxu0 0
    %178 = vmatpush1.bf16.msra.mxu0 0
    %179 = vmatprep.subr.bf16.mxu0 0
    %180 = vmatpush1.bf16.msra.mxu0 0
    %181 = vmatprep.subr.bf16.mxu0 0
    %182 = vmatpush1.bf16.msra.mxu0 0
    %183 = vmatprep.subr.bf16.mxu0 0
    %184 = vmatpush1.bf16.msra.mxu0 0
    %185 = vmatprep.subr.bf16.mxu0 0
    %186 = vmatpush1.bf16.msra.mxu0 0
    %187 = vmatprep.subr.bf16.mxu0 0
    %188 = vmatpush1.bf16.msra.mxu0 0
    %189 = vmatprep.subr.bf16.mxu0 0
    %190 = vmatpush1.bf16.msra.mxu0 0
    %191 = vmatprep.mubr.bf16.mxu0 0
    %192 = vmatmul.mubr.bf16.gmra.mrb[0].mxu0 %v103
    %v193 = vpop.f32.mrb[0].mxu0
    %v194 = vadd.f32 %v86, %v193
    %v195 = vpop.f32.mrb[0].mxu0
    %v196 = vpop.f32.mrb[0].mxu0
    %v197 = vadd.f32 %v86, %v196
    %v198 = vpop.f32.mrb[0].mxu0
    %199 = vmatprep.mubr.bf16.mxu0 0
    %200 = vmatmul.mubr.bf16.gmra.mrb[0].mxu0 %v104
    %v201 = vpop.f32.mrb[0].mxu0
    %v202 = vadd.f32 %v86, %v201
    %v203 = vpop.f32.mrb[0].mxu0
    %v204 = vpop.f32.mrb[0].mxu0
    %v205 = vadd.f32 %v86, %v204
    %v206 = vpop.f32.mrb[0].mxu0
    %207 = vmatprep.mubr.bf16.mxu0 0
    %208 = vmatmul.mubr.bf16.gmra.mrb[0].mxu0 %v105
    %v209 = vpop.f32.mrb[0].mxu0
    %v210 = vadd.f32 %v86, %v209
    %v211 = vpop.f32.mrb[0].mxu0
    %v212 = vpop.f32.mrb[0].mxu0
    %v213 = vadd.f32 %v86, %v212
    %v214 = vpop.f32.mrb[0].mxu0
    %215 = vmatprep.mubr.bf16.mxu0 0
    %216 = vmatmul.mubr.bf16.gmra.mrb[0].mxu0 %v106
    %v217 = vpop.f32.mrb[0].mxu0
    %v218 = vadd.f32 %v86, %v217
    %v219 = vpop.f32.mrb[0].mxu0
    %v220 = vpop.f32.mrb[0].mxu0
    %v221 = vadd.f32 %v86, %v220
    %v222 = vpop.f32.mrb[0].mxu0
    %223 = vdwg.mxu0
    %v224 = vmax.f32 %v194, 0.0
    %v225 = vmax.f32 %v197, 0.0
    %v226 = vmax.f32 %v202, 0.0
    %v227 = vmax.f32 %v205, 0.0
    %v228 = vmax.f32 %v210, 0.0
    %v229 = vmax.f32 %v213, 0.0
    %v230 = vmax.f32 %v218, 0.0
    %v231 = vmax.f32 %v221, 0.0
    %v232 = vadd.f32 %v224, %v225
    %v233 = vadd.f32 %v232, %v226
    %v234 = vadd.f32 %v233, %v227
    %v235 = vadd.f32 %v234, %v228
    %v236 = vadd.f32 %v235, %v229
    %v237 = vadd.f32 %v236, %v230
    %v238 = vadd.f32 %v237, %v231
    %v239 = vpack.c.bf16 %v238, %v238
    %v240 = vld [vmem:[#allocation7 + $0x40] sm:$0xf]
    %v241 = vld [vmem:[#allocation7 + $0x44] sm:$0xf]
    %v242 = vld [vmem:[#allocation7 + $0x48] sm:$0xf]
    %v243 = vld [vmem:[#allocation7 + $0x4c] sm:$0xf]
    %v244 = vld [vmem:[#allocation7 + $0x50] sm:$0xf]
    %v245 = vld [vmem:[#allocation7 + $0x54] sm:$0xf]
    %v246 = vld [vmem:[#allocation7 + $0x58] sm:$0xf]
    %v247 = vld [vmem:[#allocation7 + $0x5c] sm:$0xf]
    %v248 = vld [vmem:[#allocation7 + $0x60] sm:$0xf]
    %v249 = vld [vmem:[#allocation7 + $0x64] sm:$0xf]
    %v250 = vld [vmem:[#allocation7 + $0x68] sm:$0xf]
    %v251 = vld [vmem:[#allocation7 + $0x6c] sm:$0xf]
    %v252 = vld [vmem:[#allocation7 + $0x70] sm:$0xf]
    %v253 = vld [vmem:[#allocation7 + $0x74] sm:$0xf]
    %v254 = vld [vmem:[#allocation7 + $0x78] sm:$0xf]
    %v255 = vld [vmem:[#allocation7 + $0x7c] sm:$0xf]
    %v256 = vmul.f32 %v58, 8.0
    %v257 = vlaneseq
    %v258 = vshrl.u32 %v257, 7
    %v259 = vsub.s32 1, %v258
    %v260 = vrot.slane %v256, %v259
    %v277 = vunpack.c.l.b16 %v240
    %v278 = vunpack.c.l.b16 %v241
    %v279 = vunpack.c.l.b16 %v242
    %v280 = vunpack.c.l.b16 %v243
    %v281 = vunpack.c.l.b16 %v244
    %v282 = vunpack.c.l.b16 %v245
    %v283 = vunpack.c.l.b16 %v246
    %v284 = vunpack.c.l.b16 %v247
    %v285 = vunpack.c.l.b16 %v248
    %v286 = vunpack.c.l.b16 %v249
    %v287 = vunpack.c.l.b16 %v250
    %v288 = vunpack.c.l.b16 %v251
    %v289 = vunpack.c.l.b16 %v252
    %v290 = vunpack.c.l.b16 %v253
    %v291 = vunpack.c.l.b16 %v254
    %v292 = vunpack.c.l.b16 %v255
    %v293 = vpack.c.b16 %v278, %v277
    %v294 = vpack.c.b16 %v280, %v279
    %v295 = vpack.c.b16 %v282, %v281
    %v296 = vpack.c.b16 %v284, %v283
    %v297 = vpack.c.b16 %v286, %v285
    %v298 = vpack.c.b16 %v288, %v287
    %v299 = vpack.c.b16 %v290, %v289
    %v300 = vpack.c.b16 %v292, %v291
    %309 = vmatprep.subr.bf16.mxu0 0
    %310 = vmatpush1.bf16.msra.mxu0 %v293
    %311 = vmatprep.subr.bf16.mxu0 0
    %312 = vmatpush1.bf16.msra.mxu0 %v294
    %313 = vmatprep.subr.bf16.mxu0 0
    %314 = vmatpush1.bf16.msra.mxu0 %v295
    %315 = vmatprep.subr.bf16.mxu0 0
    %316 = vmatpush1.bf16.msra.mxu0 %v296
    %317 = vmatprep.subr.bf16.mxu0 0
    %318 = vmatpush1.bf16.msra.mxu0 %v297
    %319 = vmatprep.subr.bf16.mxu0 0
    %320 = vmatpush1.bf16.msra.mxu0 %v298
    %321 = vmatprep.subr.bf16.mxu0 0
    %322 = vmatpush1.bf16.msra.mxu0 %v299
    %323 = vmatprep.subr.bf16.mxu0 0
    %324 = vmatpush1.bf16.msra.mxu0 %v300
    %325 = vmatprep.subr.bf16.mxu0 0
    %326 = vmatpush1.bf16.msra.mxu0 0
    %327 = vmatprep.subr.bf16.mxu0 0
    %328 = vmatpush1.bf16.msra.mxu0 0
    %329 = vmatprep.subr.bf16.mxu0 0
    %330 = vmatpush1.bf16.msra.mxu0 0
    %331 = vmatprep.subr.bf16.mxu0 0
    %332 = vmatpush1.bf16.msra.mxu0 0
    %333 = vmatprep.subr.bf16.mxu0 0
    %334 = vmatpush1.bf16.msra.mxu0 0
    %335 = vmatprep.subr.bf16.mxu0 0
    %336 = vmatpush1.bf16.msra.mxu0 0
    %337 = vmatprep.subr.bf16.mxu0 0
    %338 = vmatpush1.bf16.msra.mxu0 0
    %339 = vmatprep.subr.bf16.mxu0 0
    %340 = vmatpush1.bf16.msra.mxu0 0
    %341 = vmatprep.mubr.bf16.mxu0 0
    %342 = vmatmul.mubr.bf16.gmra.mrb[0].mxu0 %v239
    %v343 = vpop.f32.mrb[0].mxu0
    %v344 = vadd.f32 %v260, %v343
    %v345 = vpop.f32.mrb[0].mxu0
    %v346 = vpop.f32.mrb[0].mxu0
    %v347 = vpop.f32.mrb[0].mxu0
    %348 = vdwg.mxu0
    %v349 = vpack.c.bf16 %v344, %v344
    %v350 = vld [vmem:[#allocation7 + $0x80] sm:$0xf]
    %v351 = vld [vmem:[#allocation7 + $0x84] sm:$0xf]
    %v352 = vld [vmem:[#allocation7 + $0x88] sm:$0xf]
    %v353 = vld [vmem:[#allocation7 + $0x8c] sm:$0xf]
    %v354 = vld [vmem:[#allocation7 + $0x90] sm:$0xf]
    %v355 = vld [vmem:[#allocation7 + $0x94] sm:$0xf]
    %v356 = vld [vmem:[#allocation7 + $0x98] sm:$0xf]
    %v357 = vld [vmem:[#allocation7 + $0x9c] sm:$0xf]
    %v358 = vld [vmem:[#allocation7 + $0xa0] sm:$0xf]
    %v359 = vld [vmem:[#allocation7 + $0xa4] sm:$0xf]
    %v360 = vld [vmem:[#allocation7 + $0xa8] sm:$0xf]
    %v361 = vld [vmem:[#allocation7 + $0xac] sm:$0xf]
    %v362 = vld [vmem:[#allocation7 + $0xb0] sm:$0xf]
    %v363 = vld [vmem:[#allocation7 + $0xb4] sm:$0xf]
    %v364 = vld [vmem:[#allocation7 + $0xb8] sm:$0xf]
    %v365 = vld [vmem:[#allocation7 + $0xbc] sm:$0xf]
    %v366 = vlaneseq
    %v367 = vshrl.u32 %v366, 7
    %v368 = vsub.s32 2, %v367
    %v369 = vrot.slane %v58, %v368
    %v386 = vunpack.c.l.b16 %v350
    %v387 = vunpack.c.l.b16 %v351
    %v388 = vunpack.c.l.b16 %v352
    %v389 = vunpack.c.l.b16 %v353
    %v390 = vunpack.c.l.b16 %v354
    %v391 = vunpack.c.l.b16 %v355
    %v392 = vunpack.c.l.b16 %v356
    %v393 = vunpack.c.l.b16 %v357
    %v394 = vunpack.c.l.b16 %v358
    %v395 = vunpack.c.l.b16 %v359
    %v396 = vunpack.c.l.b16 %v360
    %v397 = vunpack.c.l.b16 %v361
    %v398 = vunpack.c.l.b16 %v362
    %v399 = vunpack.c.l.b16 %v363
    %v400 = vunpack.c.l.b16 %v364
    %v401 = vunpack.c.l.b16 %v365
    %v402 = vpack.c.b16 %v387, %v386
    %v403 = vpack.c.b16 %v389, %v388
    %v404 = vpack.c.b16 %v391, %v390
    %v405 = vpack.c.b16 %v393, %v392
    %v406 = vpack.c.b16 %v395, %v394
    %v407 = vpack.c.b16 %v397, %v396
    %v408 = vpack.c.b16 %v399, %v398
    %v409 = vpack.c.b16 %v401, %v400
    %418 = vmatprep.subr.bf16.mxu0 0
    %419 = vmatpush1.bf16.msra.mxu0 %v402
    %420 = vmatprep.subr.bf16.mxu0 0
    %421 = vmatpush1.bf16.msra.mxu0 %v403
    %422 = vmatprep.subr.bf16.mxu0 0
    %423 = vmatpush1.bf16.msra.mxu0 %v404
    %424 = vmatprep.subr.bf16.mxu0 0
    %425 = vmatpush1.bf16.msra.mxu0 %v405
    %426 = vmatprep.subr.bf16.mxu0 0
    %427 = vmatpush1.bf16.msra.mxu0 %v406
    %428 = vmatprep.subr.bf16.mxu0 0
    %429 = vmatpush1.bf16.msra.mxu0 %v407
    %430 = vmatprep.subr.bf16.mxu0 0
    %431 = vmatpush1.bf16.msra.mxu0 %v408
    %432 = vmatprep.subr.bf16.mxu0 0
    %433 = vmatpush1.bf16.msra.mxu0 %v409
    %434 = vmatprep.subr.bf16.mxu0 0
    %435 = vmatpush1.bf16.msra.mxu0 0
    %436 = vmatprep.subr.bf16.mxu0 0
    %437 = vmatpush1.bf16.msra.mxu0 0
    %438 = vmatprep.subr.bf16.mxu0 0
    %439 = vmatpush1.bf16.msra.mxu0 0
    %440 = vmatprep.subr.bf16.mxu0 0
    %441 = vmatpush1.bf16.msra.mxu0 0
    %442 = vmatprep.subr.bf16.mxu0 0
    %443 = vmatpush1.bf16.msra.mxu0 0
    %444 = vmatprep.subr.bf16.mxu0 0
    %445 = vmatpush1.bf16.msra.mxu0 0
    %446 = vmatprep.subr.bf16.mxu0 0
    %447 = vmatpush1.bf16.msra.mxu0 0
    %448 = vmatprep.subr.bf16.mxu0 0
    %449 = vmatpush1.bf16.msra.mxu0 0
    %450 = vmatprep.mubr.bf16.mxu0 0
    %451 = vmatmul.mubr.bf16.gmra.mrb[0].mxu0 %v349
    %v452 = vpop.f32.mrb[0].mxu0
    %v453 = vadd.f32 %v369, %v452
    %v454 = vpop.f32.mrb[0].mxu0
    %v455 = vpop.f32.mrb[0].mxu0
    %v456 = vpop.f32.mrb[0].mxu0
    %457 = vdwg.mxu0
    %v458 = vmax.f32 %v453, 0.0
    %v459 = vpack.c.bf16 %v458, %v458
    %v460 = vld [vmem:[#allocation7 + $0xc0] sm:$0xf]
    %v461 = vld [vmem:[#allocation7 + $0xc4] sm:$0xf]
    %v462 = vld [vmem:[#allocation7 + $0xc8] sm:$0xf]
    %v463 = vld [vmem:[#allocation7 + $0xcc] sm:$0xf]
    %v464 = vld [vmem:[#allocation7 + $0xd0] sm:$0xf]
    %v465 = vld [vmem:[#allocation7 + $0xd4] sm:$0xf]
    %v466 = vld [vmem:[#allocation7 + $0xd8] sm:$0xf]
    %v467 = vld [vmem:[#allocation7 + $0xdc] sm:$0xf]
    %v468 = vld [vmem:[#allocation7 + $0xe0] sm:$0xf]
    %v469 = vld [vmem:[#allocation7 + $0xe4] sm:$0xf]
    %v470 = vld [vmem:[#allocation7 + $0xe8] sm:$0xf]
    %v471 = vld [vmem:[#allocation7 + $0xec] sm:$0xf]
    %v472 = vld [vmem:[#allocation7 + $0xf0] sm:$0xf]
    %v473 = vld [vmem:[#allocation7 + $0xf4] sm:$0xf]
    %v474 = vld [vmem:[#allocation7 + $0xf8] sm:$0xf]
    %v475 = vld [vmem:[#allocation7 + $0xfc] sm:$0xf]
    %v476 = vlaneseq
    %v477 = vshrl.u32 %v476, 7
    %v478 = vsub.s32 3, %v477
    %v479 = vrot.slane %v58, %v478
    %v496 = vunpack.c.l.b16 %v460
    %v497 = vunpack.c.l.b16 %v461
    %v498 = vunpack.c.l.b16 %v462
    %v499 = vunpack.c.l.b16 %v463
    %v500 = vunpack.c.l.b16 %v464
    %v501 = vunpack.c.l.b16 %v465
    %v502 = vunpack.c.l.b16 %v466
    %v503 = vunpack.c.l.b16 %v467
    %v504 = vunpack.c.l.b16 %v468
    %v505 = vunpack.c.l.b16 %v469
    %v506 = vunpack.c.l.b16 %v470
    %v507 = vunpack.c.l.b16 %v471
    %v508 = vunpack.c.l.b16 %v472
    %v509 = vunpack.c.l.b16 %v473
    %v510 = vunpack.c.l.b16 %v474
    %v511 = vunpack.c.l.b16 %v475
    %v512 = vpack.c.b16 %v497, %v496
    %v513 = vpack.c.b16 %v499, %v498
    %v514 = vpack.c.b16 %v501, %v500
    %v515 = vpack.c.b16 %v503, %v502
    %v516 = vpack.c.b16 %v505, %v504
    %v517 = vpack.c.b16 %v507, %v506
    %v518 = vpack.c.b16 %v509, %v508
    %v519 = vpack.c.b16 %v511, %v510
    %528 = vmatprep.subr.bf16.mxu0 0
    %529 = vmatpush1.bf16.msra.mxu0 %v512
    %530 = vmatprep.subr.bf16.mxu0 0
    %531 = vmatpush1.bf16.msra.mxu0 %v513
    %532 = vmatprep.subr.bf16.mxu0 0
    %533 = vmatpush1.bf16.msra.mxu0 %v514
    %534 = vmatprep.subr.bf16.mxu0 0
    %535 = vmatpush1.bf16.msra.mxu0 %v515
    %536 = vmatprep.subr.bf16.mxu0 0
    %537 = vmatpush1.bf16.msra.mxu0 %v516
    %538 = vmatprep.subr.bf16.mxu0 0
    %539 = vmatpush1.bf16.msra.mxu0 %v517
    %540 = vmatprep.subr.bf16.mxu0 0
    %541 = vmatpush1.bf16.msra.mxu0 %v518
    %542 = vmatprep.subr.bf16.mxu0 0
    %543 = vmatpush1.bf16.msra.mxu0 %v519
    %544 = vmatprep.subr.bf16.mxu0 0
    %545 = vmatpush1.bf16.msra.mxu0 0
    %546 = vmatprep.subr.bf16.mxu0 0
    %547 = vmatpush1.bf16.msra.mxu0 0
    %548 = vmatprep.subr.bf16.mxu0 0
    %549 = vmatpush1.bf16.msra.mxu0 0
    %550 = vmatprep.subr.bf16.mxu0 0
    %551 = vmatpush1.bf16.msra.mxu0 0
    %552 = vmatprep.subr.bf16.mxu0 0
    %553 = vmatpush1.bf16.msra.mxu0 0
    %554 = vmatprep.subr.bf16.mxu0 0
    %555 = vmatpush1.bf16.msra.mxu0 0
    %556 = vmatprep.subr.bf16.mxu0 0
    %557 = vmatpush1.bf16.msra.mxu0 0
    %558 = vmatprep.subr.bf16.mxu0 0
    %559 = vmatpush1.bf16.msra.mxu0 0
    %560 = vmatprep.mubr.bf16.mxu0 0
    %561 = vmatmul.mubr.bf16.gmra.mrb[0].mxu0 %v459
    %v562 = vpop.f32.mrb[0].mxu0
    %v563 = vadd.f32 %v479, %v562
    %v564 = vpop.f32.mrb[0].mxu0
    %v565 = vpop.f32.mrb[0].mxu0
    %v566 = vpop.f32.mrb[0].mxu0
    %567 = vdwg.mxu0
    %v568 = vpack.c.bf16 %v563, %v563
    %v569 = vld [vmem:[#allocation7 + $0x100] sm:$0xf]
    %v570 = vld [vmem:[#allocation7 + $0x104] sm:$0xf]
    %v571 = vld [vmem:[#allocation7 + $0x108] sm:$0xf]
    %v572 = vld [vmem:[#allocation7 + $0x10c] sm:$0xf]
    %v573 = vld [vmem:[#allocation7 + $0x110] sm:$0xf]
    %v574 = vld [vmem:[#allocation7 + $0x114] sm:$0xf]
    %v575 = vld [vmem:[#allocation7 + $0x118] sm:$0xf]
    %v576 = vld [vmem:[#allocation7 + $0x11c] sm:$0xf]
    %v577 = vld [vmem:[#allocation7 + $0x120] sm:$0xf]
    %v578 = vld [vmem:[#allocation7 + $0x124] sm:$0xf]
    %v579 = vld [vmem:[#allocation7 + $0x128] sm:$0xf]
    %v580 = vld [vmem:[#allocation7 + $0x12c] sm:$0xf]
    %v581 = vld [vmem:[#allocation7 + $0x130] sm:$0xf]
    %v582 = vld [vmem:[#allocation7 + $0x134] sm:$0xf]
    %v583 = vld [vmem:[#allocation7 + $0x138] sm:$0xf]
    %v584 = vld [vmem:[#allocation7 + $0x13c] sm:$0xf]
    %v585 = vld [vmem:[#allocation5] sm:$0xf]
    %v586 = vld [vmem:[#allocation7 + $0x140] sm:$0xf]
    %v587 = vld [vmem:[#allocation7 + $0x144] sm:$0xf]
    %v588 = vld [vmem:[#allocation7 + $0x148] sm:$0xf]
    %v589 = vld [vmem:[#allocation7 + $0x14c] sm:$0xf]
    %v590 = vld [vmem:[#allocation7 + $0x150] sm:$0xf]
    %v591 = vld [vmem:[#allocation7 + $0x154] sm:$0xf]
    %v592 = vld [vmem:[#allocation7 + $0x158] sm:$0xf]
    %v593 = vld [vmem:[#allocation7 + $0x15c] sm:$0xf]
    %v594 = vld [vmem:[#allocation7 + $0x160] sm:$0xf]
    %v595 = vld [vmem:[#allocation7 + $0x164] sm:$0xf]
    %v596 = vld [vmem:[#allocation7 + $0x168] sm:$0xf]
    %v597 = vld [vmem:[#allocation7 + $0x16c] sm:$0xf]
    %v598 = vld [vmem:[#allocation7 + $0x170] sm:$0xf]
    %v599 = vld [vmem:[#allocation7 + $0x174] sm:$0xf]
    %v600 = vld [vmem:[#allocation7 + $0x178] sm:$0xf]
    %v601 = vld [vmem:[#allocation7 + $0x17c] sm:$0xf]
    %v618 = vunpack.c.l.b16 %v586
    %v619 = vunpack.c.l.b16 %v587
    %v620 = vunpack.c.l.b16 %v588
    %v621 = vunpack.c.l.b16 %v589
    %v622 = vunpack.c.l.b16 %v590
    %v623 = vunpack.c.l.b16 %v591
    %v624 = vunpack.c.l.b16 %v592
    %v625 = vunpack.c.l.b16 %v593
    %v626 = vunpack.c.l.b16 %v594
    %v627 = vunpack.c.l.b16 %v595
    %v628 = vunpack.c.l.b16 %v596
    %v629 = vunpack.c.l.b16 %v597
    %v630 = vunpack.c.l.b16 %v598
    %v631 = vunpack.c.l.b16 %v599
    %v632 = vunpack.c.l.b16 %v600
    %v633 = vunpack.c.l.b16 %v601
    %v634 = vpack.c.b16 %v619, %v618
    %v635 = vpack.c.b16 %v621, %v620
    %v636 = vpack.c.b16 %v623, %v622
    %v637 = vpack.c.b16 %v625, %v624
    %v638 = vpack.c.b16 %v627, %v626
    %v639 = vpack.c.b16 %v629, %v628
    %v640 = vpack.c.b16 %v631, %v630
    %v641 = vpack.c.b16 %v633, %v632
    %650 = vmatprep.subr.bf16.mxu0 0
    %651 = vmatpush1.bf16.msra.mxu0 %v634
    %652 = vmatprep.subr.bf16.mxu0 0
    %653 = vmatpush1.bf16.msra.mxu0 %v635
    %654 = vmatprep.subr.bf16.mxu0 0
    %655 = vmatpush1.bf16.msra.mxu0 %v636
    %656 = vmatprep.subr.bf16.mxu0 0
    %657 = vmatpush1.bf16.msra.mxu0 %v637
    %658 = vmatprep.subr.bf16.mxu0 0
    %659 = vmatpush1.bf16.msra.mxu0 %v638
    %660 = vmatprep.subr.bf16.mxu0 0
    %661 = vmatpush1.bf16.msra.mxu0 %v639
    %662 = vmatprep.subr.bf16.mxu0 0
    %663 = vmatpush1.bf16.msra.mxu0 %v640
    %664 = vmatprep.subr.bf16.mxu0 0
    %665 = vmatpush1.bf16.msra.mxu0 %v641
    %666 = vmatprep.subr.bf16.mxu0 0
    %667 = vmatpush1.bf16.msra.mxu0 0
    %668 = vmatprep.subr.bf16.mxu0 0
    %669 = vmatpush1.bf16.msra.mxu0 0
    %670 = vmatprep.subr.bf16.mxu0 0
    %671 = vmatpush1.bf16.msra.mxu0 0
    %672 = vmatprep.subr.bf16.mxu0 0
    %673 = vmatpush1.bf16.msra.mxu0 0
    %674 = vmatprep.subr.bf16.mxu0 0
    %675 = vmatpush1.bf16.msra.mxu0 0
    %676 = vmatprep.subr.bf16.mxu0 0
    %677 = vmatpush1.bf16.msra.mxu0 0
    %678 = vmatprep.subr.bf16.mxu0 0
    %679 = vmatpush1.bf16.msra.mxu0 0
    %680 = vmatprep.subr.bf16.mxu0 0
    %681 = vmatpush1.bf16.msra.mxu0 0
    %682 = vmatprep.mubr.bf16.mxu0 0
    %683 = vmatmul.mubr.bf16.gmra.mrb[0].mxu0 %v585
    %v684 = vpop.f32.mrb[0].mxu0
    %v685 = vadd.f32 0.0, %v684
    %v686 = vpop.f32.mrb[0].mxu0
    %v687 = vpop.f32.mrb[0].mxu0
    %v688 = vpop.f32.mrb[0].mxu0
    %689 = vdwg.mxu0
    %v706 = vunpack.c.l.b16 %v569
    %v707 = vunpack.c.l.b16 %v570
    %v708 = vunpack.c.l.b16 %v571
    %v709 = vunpack.c.l.b16 %v572
    %v710 = vunpack.c.l.b16 %v573
    %v711 = vunpack.c.l.b16 %v574
    %v712 = vunpack.c.l.b16 %v575
    %v713 = vunpack.c.l.b16 %v576
    %v714 = vunpack.c.l.b16 %v577
    %v715 = vunpack.c.l.b16 %v578
    %v716 = vunpack.c.l.b16 %v579
    %v717 = vunpack.c.l.b16 %v580
    %v718 = vunpack.c.l.b16 %v581
    %v719 = vunpack.c.l.b16 %v582
    %v720 = vunpack.c.l.b16 %v583
    %v721 = vunpack.c.l.b16 %v584
    %v722 = vpack.c.b16 %v707, %v706
    %v723 = vpack.c.b16 %v709, %v708
    %v724 = vpack.c.b16 %v711, %v710
    %v725 = vpack.c.b16 %v713, %v712
    %v726 = vpack.c.b16 %v715, %v714
    %v727 = vpack.c.b16 %v717, %v716
    %v728 = vpack.c.b16 %v719, %v718
    %v729 = vpack.c.b16 %v721, %v720
    %738 = vmatprep.subr.bf16.mxu0 0
    %739 = vmatpush1.bf16.msra.mxu0 %v722
    %740 = vmatprep.subr.bf16.mxu0 0
    %741 = vmatpush1.bf16.msra.mxu0 %v723
    %742 = vmatprep.subr.bf16.mxu0 0
    %743 = vmatpush1.bf16.msra.mxu0 %v724
    %744 = vmatprep.subr.bf16.mxu0 0
    %745 = vmatpush1.bf16.msra.mxu0 %v725
    %746 = vmatprep.subr.bf16.mxu0 0
    %747 = vmatpush1.bf16.msra.mxu0 %v726
    %748 = vmatprep.subr.bf16.mxu0 0
    %749 = vmatpush1.bf16.msra.mxu0 %v727
    %750 = vmatprep.subr.bf16.mxu0 0
    %751 = vmatpush1.bf16.msra.mxu0 %v728
    %752 = vmatprep.subr.bf16.mxu0 0
    %753 = vmatpush1.bf16.msra.mxu0 %v729
    %754 = vmatprep.subr.bf16.mxu0 0
    %755 = vmatpush1.bf16.msra.mxu0 0
    %756 = vmatprep.subr.bf16.mxu0 0
    %757 = vmatpush1.bf16.msra.mxu0 0
    %758 = vmatprep.subr.bf16.mxu0 0
    %759 = vmatpush1.bf16.msra.mxu0 0
    %760 = vmatprep.subr.bf16.mxu0 0
    %761 = vmatpush1.bf16.msra.mxu0 0
    %762 = vmatprep.subr.bf16.mxu0 0
    %763 = vmatpush1.bf16.msra.mxu0 0
    %764 = vmatprep.subr.bf16.mxu0 0
    %765 = vmatpush1.bf16.msra.mxu0 0
    %766 = vmatprep.subr.bf16.mxu0 0
    %767 = vmatpush1.bf16.msra.mxu0 0
    %768 = vmatprep.subr.bf16.mxu0 0
    %769 = vmatpush1.bf16.msra.mxu0 0
    %770 = vmatprep.mubr.bf16.mxu0 0
    %771 = vmatmul.mubr.bf16.gmra.mrb[0].mxu0 %v568
    %v772 = vpop.f32.mrb[0].mxu0
    %v773 = vadd.f32 %v685, %v772
    %v774 = vpop.f32.mrb[0].mxu0
    %v775 = vpop.f32.mrb[0].mxu0
    %v776 = vpop.f32.mrb[0].mxu0
    %777 = vdwg.mxu0
    %v778 = vlaneseq
    %v779 = vshrl.u32 %v778, 7
    %v780 = vsub.s32 4, %v779
    %v781 = vrot.slane %v58, %v780
    %v782 = vadd.f32 %v773, %v781
    %v783 = vmax.f32 %v782, 0.0
    %v784 = vpack.c.bf16 %v783, %v783
    %v785 = vld [vmem:[#allocation7 + $0x180] sm:$0xf]
    %v786 = vld [vmem:[#allocation7 + $0x184] sm:$0xf]
    %v787 = vld [vmem:[#allocation7 + $0x188] sm:$0xf]
    %v788 = vld [vmem:[#allocation7 + $0x18c] sm:$0xf]
    %v789 = vld [vmem:[#allocation7 + $0x190] sm:$0xf]
    %v790 = vld [vmem:[#allocation7 + $0x194] sm:$0xf]
    %v791 = vld [vmem:[#allocation7 + $0x198] sm:$0xf]
    %v792 = vld [vmem:[#allocation7 + $0x19c] sm:$0xf]
    %v793 = vld [vmem:[#allocation7 + $0x1a0] sm:$0xf]
    %v794 = vld [vmem:[#allocation7 + $0x1a4] sm:$0xf]
    %v795 = vld [vmem:[#allocation7 + $0x1a8] sm:$0xf]
    %v796 = vld [vmem:[#allocation7 + $0x1ac] sm:$0xf]
    %v797 = vld [vmem:[#allocation7 + $0x1b0] sm:$0xf]
    %v798 = vld [vmem:[#allocation7 + $0x1b4] sm:$0xf]
    %v799 = vld [vmem:[#allocation7 + $0x1b8] sm:$0xf]
    %v800 = vld [vmem:[#allocation7 + $0x1bc] sm:$0xf]
    %v801 = vlaneseq
    %v802 = vshrl.u32 %v801, 7
    %v803 = vsub.s32 5, %v802
    %v804 = vrot.slane %v58, %v803
    %v821 = vunpack.c.l.b16 %v785
    %v822 = vunpack.c.l.b16 %v786
    %v823 = vunpack.c.l.b16 %v787
    %v824 = vunpack.c.l.b16 %v788
    %v825 = vunpack.c.l.b16 %v789
    %v826 = vunpack.c.l.b16 %v790
    %v827 = vunpack.c.l.b16 %v791
    %v828 = vunpack.c.l.b16 %v792
    %v829 = vunpack.c.l.b16 %v793
    %v830 = vunpack.c.l.b16 %v794
    %v831 = vunpack.c.l.b16 %v795
    %v832 = vunpack.c.l.b16 %v796
    %v833 = vunpack.c.l.b16 %v797
    %v834 = vunpack.c.l.b16 %v798
    %v835 = vunpack.c.l.b16 %v799
    %v836 = vunpack.c.l.b16 %v800
    %v837 = vpack.c.b16 %v822, %v821
    %v838 = vpack.c.b16 %v824, %v823
    %v839 = vpack.c.b16 %v826, %v825
    %v840 = vpack.c.b16 %v828, %v827
    %v841 = vpack.c.b16 %v830, %v829
    %v842 = vpack.c.b16 %v832, %v831
    %v843 = vpack.c.b16 %v834, %v833
    %v844 = vpack.c.b16 %v836, %v835
    %853 = vmatprep.subr.bf16.mxu0 0
    %854 = vmatpush1.bf16.msra.mxu0 %v837
    %855 = vmatprep.subr.bf16.mxu0 0
    %856 = vmatpush1.bf16.msra.mxu0 %v838
    %857 = vmatprep.subr.bf16.mxu0 0
    %858 = vmatpush1.bf16.msra.mxu0 %v839
    %859 = vmatprep.subr.bf16.mxu0 0
    %860 = vmatpush1.bf16.msra.mxu0 %v840
    %861 = vmatprep.subr.bf16.mxu0 0
    %862 = vmatpush1.bf16.msra.mxu0 %v841
    %863 = vmatprep.subr.bf16.mxu0 0
    %864 = vmatpush1.bf16.msra.mxu0 %v842
    %865 = vmatprep.subr.bf16.mxu0 0
    %866 = vmatpush1.bf16.msra.mxu0 %v843
    %867 = vmatprep.subr.bf16.mxu0 0
    %868 = vmatpush1.bf16.msra.mxu0 %v844
    %869 = vmatprep.subr.bf16.mxu0 0
    %870 = vmatpush1.bf16.msra.mxu0 0
    %871 = vmatprep.subr.bf16.mxu0 0
    %872 = vmatpush1.bf16.msra.mxu0 0
    %873 = vmatprep.subr.bf16.mxu0 0
    %874 = vmatpush1.bf16.msra.mxu0 0
    %875 = vmatprep.subr.bf16.mxu0 0
    %876 = vmatpush1.bf16.msra.mxu0 0
    %877 = vmatprep.subr.bf16.mxu0 0
    %878 = vmatpush1.bf16.msra.mxu0 0
    %879 = vmatprep.subr.bf16.mxu0 0
    %880 = vmatpush1.bf16.msra.mxu0 0
    %881 = vmatprep.subr.bf16.mxu0 0
    %882 = vmatpush1.bf16.msra.mxu0 0
    %883 = vmatprep.subr.bf16.mxu0 0
    %884 = vmatpush1.bf16.msra.mxu0 0
    %885 = vmatprep.mubr.bf16.mxu0 0
    %886 = vmatmul.mubr.bf16.gmra.mrb[0].mxu0 %v784
    %v887 = vpop.f32.mrb[0].mxu0
    %v888 = vadd.f32 %v804, %v887
    %v889 = vpop.f32.mrb[0].mxu0
    %v890 = vpop.f32.mrb[0].mxu0
    %v891 = vpop.f32.mrb[0].mxu0
    %892 = vdwg.mxu0
    %v893 = vmax.f32 %v888, 0.0
    %v894 = vpack.c.bf16 %v893, %v893
    %v895 = vld [vmem:[#allocation7 + $0x1c0] sm:$0xf]
    %v896 = vld [vmem:[#allocation7 + $0x1c4] sm:$0xf]
    %v897 = vld [vmem:[#allocation7 + $0x1c8] sm:$0xf]
    %v898 = vld [vmem:[#allocation7 + $0x1cc] sm:$0xf]
    %v899 = vld [vmem:[#allocation7 + $0x1d0] sm:$0xf]
    %v900 = vld [vmem:[#allocation7 + $0x1d4] sm:$0xf]
    %v901 = vld [vmem:[#allocation7 + $0x1d8] sm:$0xf]
    %v902 = vld [vmem:[#allocation7 + $0x1dc] sm:$0xf]
    %v903 = vld [vmem:[#allocation7 + $0x1e0] sm:$0xf]
    %v904 = vld [vmem:[#allocation7 + $0x1e4] sm:$0xf]
    %v905 = vld [vmem:[#allocation7 + $0x1e8] sm:$0xf]
    %v906 = vld [vmem:[#allocation7 + $0x1ec] sm:$0xf]
    %v907 = vld [vmem:[#allocation7 + $0x1f0] sm:$0xf]
    %v908 = vld [vmem:[#allocation7 + $0x1f4] sm:$0xf]
    %v909 = vld [vmem:[#allocation7 + $0x1f8] sm:$0xf]
    %v910 = vld [vmem:[#allocation7 + $0x1fc] sm:$0xf]
    %v911 = vlaneseq
    %v912 = vshrl.u32 %v911, 7
    %v913 = vsub.s32 6, %v912
    %v914 = vrot.slane %v58, %v913
    %v931 = vunpack.c.l.b16 %v895
    %v932 = vunpack.c.l.b16 %v896
    %v933 = vunpack.c.l.b16 %v897
    %v934 = vunpack.c.l.b16 %v898
    %v935 = vunpack.c.l.b16 %v899
    %v936 = vunpack.c.l.b16 %v900
    %v937 = vunpack.c.l.b16 %v901
    %v938 = vunpack.c.l.b16 %v902
    %v939 = vunpack.c.l.b16 %v903
    %v940 = vunpack.c.l.b16 %v904
    %v941 = vunpack.c.l.b16 %v905
    %v942 = vunpack.c.l.b16 %v906
    %v943 = vunpack.c.l.b16 %v907
    %v944 = vunpack.c.l.b16 %v908
    %v945 = vunpack.c.l.b16 %v909
    %v946 = vunpack.c.l.b16 %v910
    %v947 = vpack.c.b16 %v932, %v931
    %v948 = vpack.c.b16 %v934, %v933
    %v949 = vpack.c.b16 %v936, %v935
    %v950 = vpack.c.b16 %v938, %v937
    %v951 = vpack.c.b16 %v940, %v939
    %v952 = vpack.c.b16 %v942, %v941
    %v953 = vpack.c.b16 %v944, %v943
    %v954 = vpack.c.b16 %v946, %v945
    %963 = vmatprep.subr.bf16.mxu0 0
    %964 = vmatpush1.bf16.msra.mxu0 %v947
    %965 = vmatprep.subr.bf16.mxu0 0
    %966 = vmatpush1.bf16.msra.mxu0 %v948
    %967 = vmatprep.subr.bf16.mxu0 0
    %968 = vmatpush1.bf16.msra.mxu0 %v949
    %969 = vmatprep.subr.bf16.mxu0 0
    %970 = vmatpush1.bf16.msra.mxu0 %v950
    %971 = vmatprep.subr.bf16.mxu0 0
    %972 = vmatpush1.bf16.msra.mxu0 %v951
    %973 = vmatprep.subr.bf16.mxu0 0
    %974 = vmatpush1.bf16.msra.mxu0 %v952
    %975 = vmatprep.subr.bf16.mxu0 0
    %976 = vmatpush1.bf16.msra.mxu0 %v953
    %977 = vmatprep.subr.bf16.mxu0 0
    %978 = vmatpush1.bf16.msra.mxu0 %v954
    %979 = vmatprep.subr.bf16.mxu0 0
    %980 = vmatpush1.bf16.msra.mxu0 0
    %981 = vmatprep.subr.bf16.mxu0 0
    %982 = vmatpush1.bf16.msra.mxu0 0
    %983 = vmatprep.subr.bf16.mxu0 0
    %984 = vmatpush1.bf16.msra.mxu0 0
    %985 = vmatprep.subr.bf16.mxu0 0
    %986 = vmatpush1.bf16.msra.mxu0 0
    %987 = vmatprep.subr.bf16.mxu0 0
    %988 = vmatpush1.bf16.msra.mxu0 0
    %989 = vmatprep.subr.bf16.mxu0 0
    %990 = vmatpush1.bf16.msra.mxu0 0
    %991 = vmatprep.subr.bf16.mxu0 0
    %992 = vmatpush1.bf16.msra.mxu0 0
    %993 = vmatprep.subr.bf16.mxu0 0
    %994 = vmatpush1.bf16.msra.mxu0 0
    %995 = vmatprep.mubr.bf16.mxu0 0
    %996 = vmatmul.mubr.bf16.gmra.mrb[0].mxu0 %v894
    %v997 = vpop.f32.mrb[0].mxu0
    %v998 = vadd.f32 %v914, %v997
    %v999 = vpop.f32.mrb[0].mxu0
    %v1000 = vpop.f32.mrb[0].mxu0
    %v1001 = vpop.f32.mrb[0].mxu0
    %1002 = vdwg.mxu0
    %1003 = vst [vmem:[#allocation8] sm:$0xff] %v998
    // Predicated region
    $region30: #{tpu_custom_call.1} parent=1 // pred_check
      _
    $region31: #{tpu_custom_call.1} parent=1 // pred_check_branch
      %1005 = sbr.rel (0) target = $region33
    $region32: #{tpu_custom_call.1} parent=1 // pred_region
      %s1007 = ssub.s32 128, 128
      %1008 = vsyncadd [#allocation4], %s1007
      %s1010 = sshll.u32 [#allocation8], 4
      %s1011 = int_to_ptr.vmem [resolvable:$true] %s1010
      %1013 = dma.vmem_to_hbm [thread:$0]  %s1011, 128, %s4, [#allocation4]
    $region33: #{tpu_custom_call.1} parent=1 // pred_fallthru
      _
    // Predicated region
    $region34: #{tpu_custom_call.1} parent=1 // pred_check
      _
    $region35: #{tpu_custom_call.1} parent=1 // pred_check_branch
      %1015 = sbr.rel (0) target = $region37
    $region36: #{tpu_custom_call.1} parent=1 // pred_region
      %1016 = dma.done [#allocation4], 128
    $region37: #{tpu_custom_call.1} parent=1 // pred_fallthru
      _
    %1017 = vsyncpa [#allocation3], 1
    %1018 = vsyncpa [#allocation6], 1
    %1019 = vsyncpa [#allocation4], 1

</llo_original>
